<compile_context>
chip_gen: v5e
topology: v5e:2x2
jax: 0.10.0
libtpu: 0.0.40
codegen_flags: <defaults>
</compile_context>

<pallas_src>
import functools
import math

import jax
import jax.numpy as jnp
from jax import lax
from jax.experimental import pallas as pl
from jax.experimental.pallas import tpu as pltpu


def _arcface_kernel(x_ref, w_ref, inv_norm_ref, label_ref, out_ref, *, s, m, tile_c):
    ci = pl.program_id(0)  # class-tile index (outer grid axis)

    x = x_ref[...]                 # [TB, D]
    w = w_ref[...]                 # [TC, D]
    inv_norm = inv_norm_ref[...]   # [1, TC] f32, precomputed 1/||w_row||
    labels = label_ref[...]        # [TB, 1] i32

    # x @ w.T on the MXU with f32 accumulation.
    raw = lax.dot_general(
        x, w,
        dimension_numbers=(((1,), (1,)), ((), ())),
        preferred_element_type=jnp.float32,
    )  # [TB, TC]

    # Column-scale by precomputed inverse row norms -> cosine, then clamp.
    cosine = raw * inv_norm
    cosine = jnp.clip(cosine, -1.0 + 1e-7, 1.0 - 1e-7)

    # cos(acos(c) + m) == c*cos(m) - sqrt(1-c^2)*sin(m)  (exact identity)
    sine = jnp.sqrt(1.0 - cosine * cosine)
    target_cosine = cosine * math.cos(m) - sine * math.sin(m)

    # One-hot blend as a single select; iota offset by this C-tile's origin.
    class_ids = ci * tile_c + lax.broadcasted_iota(jnp.int32, cosine.shape, 1)
    out_ref[...] = jnp.where(class_ids == labels, target_cosine, cosine) * s


def _pick_tile(dim, preferred, align):
    """Largest tile <= preferred that divides dim and is a multiple of align;
    falls back to the full dim (a full-extent block is always legal)."""
    if dim <= preferred:
        return dim
    t = (preferred // align) * align
    while t >= align:
        if dim % t == 0:
            return t
        t -= align
    return dim


def arcface_forward(x, weight, label, *, s=128.0, m=0.1,
                    tile_b=None, tile_c=None, mxu_dtype=None):
    """x: [B, D] f32, weight: [C, D] f32, label: [B] int -> [B, C] f32."""
    B, D = x.shape
    C, D2 = weight.shape
    assert D == D2, "in_features mismatch"

    if tile_b is None:
        tile_b = _pick_tile(B, 256, 8)      # fill the MXU M dimension
    if tile_c is None:
        tile_c = _pick_tile(C, 1024, 128)   # lane-dense output, VMEM-friendly
    assert B % tile_b == 0 and C % tile_c == 0

    # Precompute 1/||w_row|| once in the wrapper (matches F.normalize eps=1e-12).
    w_f32 = weight.astype(jnp.float32)
    norm = jnp.sqrt(jnp.sum(w_f32 * w_f32, axis=1, keepdims=True))
    inv_norm = (1.0 / jnp.maximum(norm, 1e-12)).reshape(1, C).astype(jnp.float32)

    if mxu_dtype is not None:
        x = x.astype(mxu_dtype)
        weight = weight.astype(mxu_dtype)

    # Labels as a [B, 1] i32 column (tiny; broadcast-compared against the iota).
    label2d = label.astype(jnp.int32).reshape(B, 1)

    kernel = functools.partial(_arcface_kernel, s=float(s), m=float(m),
                               tile_c=tile_c)

    # VMEM budget: double-buffered inputs/outputs plus f32 epilogue temporaries.
    x_bytes = jnp.dtype(x.dtype).itemsize
    w_bytes = jnp.dtype(weight.dtype).itemsize
    vmem_est = (
        2 * tile_b * D * x_bytes          # x tiles
        + 2 * tile_c * D * w_bytes        # weight tile (resident across inner axis)
        + 2 * tile_b * tile_c * 4         # out tiles
        + 2 * tile_c * 4                  # inv_norm tile
        + 2 * tile_b * 4                  # label tile
        + 6 * tile_b * tile_c * 4         # f32 intermediates headroom
    )
    vmem_limit = max(32 * 1024 * 1024, int(vmem_est * 1.5))

    grid = (C // tile_c, B // tile_b)     # C outer: weight read from HBM once

    return pl.pallas_call(
        kernel,
        out_shape=jax.ShapeDtypeStruct((B, C), jnp.float32),
        grid_spec=pltpu.PrefetchScalarGridSpec(
            num_scalar_prefetch=0,
            grid=grid,
            in_specs=[
                pl.BlockSpec((tile_b, D), lambda ci, bi: (bi, 0)),   # x tile
                pl.BlockSpec((tile_c, D), lambda ci, bi: (ci, 0)),   # weight tile
                pl.BlockSpec((1, tile_c), lambda ci, bi: (0, ci)),   # inv row norms
                pl.BlockSpec((tile_b, 1), lambda ci, bi: (bi, 0)),   # labels
            ],
            out_specs=pl.BlockSpec((tile_b, tile_c), lambda ci, bi: (bi, ci)),
        ),
        compiler_params=pltpu.CompilerParams(
            dimension_semantics=("parallel", "parallel"),
            vmem_limit_bytes=vmem_limit,
        ),
    )(x, weight, inv_norm, label2d)


def _reference(x, weight, label, s=128.0, m=0.1):
    """Pure-JAX reference mirroring the PyTorch forward."""
    norm = jnp.sqrt(jnp.sum(weight * weight, axis=1, keepdims=True))
    w_n = weight / jnp.maximum(norm, 1e-12)
    cosine = x @ w_n.T
    cosine = jnp.clip(cosine, -1.0 + 1e-7, 1.0 - 1e-7)
    theta = jnp.arccos(cosine)
    target_cosine = jnp.cos(theta + m)
    one_hot = jax.nn.one_hot(label, weight.shape[0], dtype=jnp.float32)
    return (one_hot * target_cosine + (1.0 - one_hot) * cosine) * s


if __name__ == "__main__":
    # Small shapes consistent with the module, but chosen so the grid has
    # multiple B and C tiles (exercises the C-tiled index maps + iota offset).
    B, D, C = 16, 32, 256          # batch, in_features, out_features
    s_val, m_val = 128.0, 0.1

    key = jax.random.PRNGKey(0)
    kx, kw, kl = jax.random.split(key, 3)

    # xavier_uniform_ on weight [out_features, in_features]
    bound = math.sqrt(6.0 / (D + C))
    weight = jax.random.uniform(kw, (C, D), jnp.float32, -bound, bound)

    x = jax.random.normal(kx, (B, D), jnp.float32)
    label = jax.random.randint(kl, (B,), 0, C, jnp.int32)

    # tile_b=8, tile_c=128 -> grid (2 class tiles, 2 batch tiles).
    out = arcface_forward(x, weight, label, s=s_val, m=m_val,
                          tile_b=8, tile_c=128)
    out = jax.block_until_ready(out)

    ref = _reference(x, weight, label, s=s_val, m=m_val)
    assert out.shape == (B, C)
    assert jnp.allclose(out, ref, atol=2e-3, rtol=1e-3), "mismatch vs reference"

    print("KERNEL_OK")
</pallas_src>

<mosaic_0001>
module attributes {stable_mosaic.version = 11 : i64} {
  func.func @_arcface_kernel(%arg0: i32, %arg1: i32, %arg2: memref<8x32xf32, #tpu.memory_space<vmem>>, %arg3: memref<128x32xf32, #tpu.memory_space<vmem>>, %arg4: memref<1x128xf32, #tpu.memory_space<vmem>>, %arg5: memref<8x1xi32, #tpu.memory_space<vmem>>, %arg6: memref<8x128xf32, #tpu.memory_space<vmem>>) attributes {dimension_semantics = [#tpu.dimension_semantics<parallel>, #tpu.dimension_semantics<parallel>], iteration_bounds = array<i64: 2, 2>, scalar_prefetch = 0 : i64, scratch_operands = 0 : i64, tpu.core_type = #tpu.core_type<tc>, window_params = [{transform_indices = @transform_0, window_bounds = array<i64: 8, 32>}, {transform_indices = @transform_1, window_bounds = array<i64: 128, 32>}, {transform_indices = @transform_2, window_bounds = array<i64: 1, 128>}, {transform_indices = @transform_3, window_bounds = array<i64: 8, 1>}, {transform_indices = @transform_4, window_bounds = array<i64: 8, 128>}]} {
    %c0 = arith.constant 0 : index
    %c0_0 = arith.constant 0 : index
    %0 = vector.load %arg2[%c0, %c0_0] : memref<8x32xf32, #tpu.memory_space<vmem>>, vector<8x32xf32>
    %c0_1 = arith.constant 0 : index
    %c0_2 = arith.constant 0 : index
    %1 = vector.load %arg3[%c0_1, %c0_2] : memref<128x32xf32, #tpu.memory_space<vmem>>, vector<128x32xf32>
    %c0_3 = arith.constant 0 : index
    %c0_4 = arith.constant 0 : index
    %2 = vector.load %arg4[%c0_3, %c0_4] : memref<1x128xf32, #tpu.memory_space<vmem>>, vector<1x128xf32>
    %c0_5 = arith.constant 0 : index
    %c0_6 = arith.constant 0 : index
    %3 = vector.load %arg5[%c0_5, %c0_6] : memref<8x1xi32, #tpu.memory_space<vmem>>, vector<8x1xi32>
    %cst = arith.constant dense<0.000000e+00> : vector<8x128xf32>
    %4 = tpu.matmul %0, %1, %cst {dimension_numbers = #tpu.dot_dimension_numbers<[1], [1], [0], [0], [0, 0, 1, 0], [], []>} : vector<8x32xf32>, vector<128x32xf32>, vector<8x128xf32> -> vector<8x128xf32>
    %5 = vector.broadcast %2 : vector<1x128xf32> to vector<8x128xf32>
    %6 = arith.mulf %4, %5 : vector<8x128xf32>
    %cst_7 = arith.constant -0.99999988 : f32
    %cst_8 = arith.constant 0.99999988 : f32
    %7 = vector.broadcast %cst_7 : f32 to vector<8x128xf32>
    %8 = arith.maximumf %7, %6 : vector<8x128xf32>
    %9 = vector.broadcast %cst_8 : f32 to vector<8x128xf32>
    %10 = arith.minimumf %9, %8 : vector<8x128xf32>
    %11 = arith.mulf %10, %10 : vector<8x128xf32>
    %cst_9 = arith.constant 1.000000e+00 : f32
    %12 = vector.broadcast %cst_9 : f32 to vector<8x128xf32>
    %13 = arith.subf %12, %11 : vector<8x128xf32>
    %14 = math.sqrt %13 : vector<8x128xf32>
    %cst_10 = arith.constant 0.995004177 : f32
    %15 = vector.broadcast %cst_10 : f32 to vector<8x128xf32>
    %16 = arith.mulf %10, %15 : vector<8x128xf32>
    %cst_11 = arith.constant 0.0998334139 : f32
    %17 = vector.broadcast %cst_11 : f32 to vector<8x128xf32>
    %18 = arith.mulf %14, %17 : vector<8x128xf32>
    %19 = arith.subf %16, %18 : vector<8x128xf32>
    %c128_i32 = arith.constant 128 : i32
    %20 = arith.muli %arg0, %c128_i32 : i32
    %21 = tpu.iota {dimensions = array<i32: 1>} : vector<8x128xi32>
    %22 = vector.broadcast %20 : i32 to vector<8x128xi32>
    %23 = arith.addi %22, %21 : vector<8x128xi32>
    %24 = vector.broadcast %3 : vector<8x1xi32> to vector<8x128xi32>
    %25 = arith.cmpi eq, %23, %24 : vector<8x128xi32>
    %26 = arith.select %25, %19, %10 : vector<8x128xi1>, vector<8x128xf32>
    %cst_12 = arith.constant 1.280000e+02 : f32
    %27 = vector.broadcast %cst_12 : f32 to vector<8x128xf32>
    %28 = arith.mulf %26, %27 : vector<8x128xf32>
    %c0_13 = arith.constant 0 : index
    %c0_14 = arith.constant 0 : index
    %29 = vector.load %arg6[%c0_13, %c0_14] : memref<8x128xf32, #tpu.memory_space<vmem>>, vector<8x128xf32>
    tpu.vector_store %arg6[%c0_13, %c0_14], %28 {strides = array<i32>} : memref<8x128xf32, #tpu.memory_space<vmem>>, vector<8x128xf32>,
    return
  }
  func.func @transform_0(%arg0: i32, %arg1: i32) -> (i32, i32) {
    %c0_i32 = arith.constant 0 : i32
    %c0_i32_0 = arith.constant 0 : i32
    return %arg1, %c0_i32 : i32, i32
  }
  func.func @transform_1(%arg0: i32, %arg1: i32) -> (i32, i32) {
    %c0_i32 = arith.constant 0 : i32
    %c0_i32_0 = arith.constant 0 : i32
    return %arg0, %c0_i32 : i32, i32
  }
  func.func @transform_2(%arg0: i32, %arg1: i32) -> (i32, i32) {
    %c0_i32 = arith.constant 0 : i32
    %c0_i32_0 = arith.constant 0 : i32
    return %c0_i32, %arg0 : i32, i32
  }
  func.func @transform_3(%arg0: i32, %arg1: i32) -> (i32, i32) {
    %c0_i32 = arith.constant 0 : i32
    %c0_i32_0 = arith.constant 0 : i32
    return %arg1, %c0_i32 : i32, i32
  }
  func.func @transform_4(%arg0: i32, %arg1: i32) -> (i32, i32) {
    %c0_i32 = arith.constant 0 : i32
    return %arg1, %arg0 : i32, i32
  }
}

</mosaic_0001>

<llo_original>
// kernel: tpu_custom_call.1
$region0: #{tpu_custom_call.1}
  #allocation0 [shape = 'u32[]', space=smem, size = 0x4, offset = 0x4, fixed_abs, tag = 'smem constant byte address 0x4 - core index']
  #allocation1 [shape = 'u32[72,128]{1,0:T(1,128)}', space=vmem, size = 0x9000, scoped, tag = 'internal scratch']
  %s0 = inlined_call_operand.vmem [shape: f32[16,32], index: 0, kind: input, shape index: {}]
  %s1 = inlined_call_operand.vmem [shape: f32[256,32], index: 1, kind: input, shape index: {}]
  %s2 = inlined_call_operand.vmem [shape: f32[1,256], index: 2, kind: input, shape index: {}]
  %s3 = inlined_call_operand.vmem [shape: s32[16,1], index: 3, kind: input, shape index: {}]
  %s4 = inlined_call_operand.hbm [shape: f32[16,256], index: 4, kind: output, shape index: {}]
  %s5 = sld [smem:[#allocation0]]
  $region49: #{tpu_custom_call.1} parent=0
    _
  %s7 = ssub.s32 1, %s5
  %s8 = scalar_select 0, %s7, %s5
  $region1: #{tpu_custom_call.1} parent=0
    #allocation2 [shape = 'u8[8192]{0}', space=vmem, size = 0x2000, scoped, tag = 'output window, operand 0']
    #allocation3 [shape = 's32[2]{0}', space=sflag, size = 0x8, scoped, tag = 'scoped memory for tpu_custom_call.1']
    %9 = vsyncpa [#allocation3], 0
    %s10 = scalar_lea.sflag [#allocation3], 1
    %11 = vsyncpa %s10, 0
    loop: start=0, step=1, limit=6
    $region2: #{tpu_custom_call.1} parent=1 // loop_pre_header
      _
    $region3: #{tpu_custom_call.1} parent=1 // loop_header
      %s13 = sphi 0, %s17
      %p14 = scmp.ge.s32.totalorder %s13, 6
      %s20 = sphi 0, %s32
      %s21 = sphi 0, %s28
      %s22 = sphi 0, %s20
      %s23 = sphi 0, %s21
      %s24 = sphi 0, %s22
      %s25 = sphi 0, %s23
      %s35 = sphi 0, %s37
      %s38 = sphi 0, %s35
      %s39 = sphi 0, %s38
      %s55 = sphi 0, %s39
      %s61 = sphi 0, %s63
      %s64 = sphi 0, %s61
      %s65 = sphi 0, %s64
      %s81 = sphi 0, %s65
      %s87 = sphi 0, %s89
      %s90 = sphi 0, %s87
      %s91 = sphi 0, %s90
      %s107 = sphi 0, %s91
      %s113 = sphi 0, %s115
      %s116 = sphi 0, %s113
      %s117 = sphi 0, %s116
      %s133 = sphi 0, %s117
      %s141 = sphi 0, %s143
      %s144 = sphi 0, %s141
      %s145 = sphi 0, %s144
      %s161 = sphi 0, %s145
    $region4: #{tpu_custom_call.1} parent=1 // loop_header_branch
      %16 = sbr.rel (%p14) target = $region8
    $region5: #{tpu_custom_call.1} parent=1 // loop_body
      %s18 = ssub.s32 %s13, 1
      %s19 = ssub.s32 %s13, 2
      %s26 = sadd.s32 1, %s21
      %p27 = scmp.ge.s32.totalorder %s26, 2
      %s28 = scalar_select %p27, 0, %s26
      %s29 = sadd.s32 1, %s20
      %s30 = scalar_select %p27, %s29, %s20
      %p31 = scmp.ge.s32.totalorder %s30, 2
      %s32 = scalar_select %p31, 0, %s30
      %s33 = ssub.s32 %s21, %s28
      %p34 = scmp.eq.s32.totalorder %s33, 0
      %s36 = sadd.s32 %s35, 1
      %s37 = scalar_select %p34, %s35, %s36
      %p40 = pneg %p34
      %p41 = scmp.eq.s32.totalorder %s13, 3
      %p42 = por %p40, %p41
      %p43 = scmp.ne.s32.totalorder %s35, %s38
      %p44 = scmp.eq.s32.totalorder %s13, 0
      %p45 = por %p43, %p44
      %p46 = scmp.ne.s32.totalorder %s35, %s38
      %p47 = scmp.eq.s32.totalorder %s18, 3
      %p48 = por %p46, %p47
      %p49 = scmp.ne.s32.totalorder %s38, %s39
      %p50 = scmp.eq.s32.totalorder %s18, 0
      %p51 = por %p49, %p50
      %p52 = scmp.ne.s32.totalorder %s38, %s39
      %p53 = scmp.eq.s32.totalorder %s19, 3
      %p54 = por %p52, %p53
      %p56 = scmp.ne.s32.totalorder %s39, %s55
      %p57 = scmp.eq.s32.totalorder %s19, 0
      %p58 = por %p56, %p57
      %s59 = ssub.s32 %s20, %s32
      %p60 = scmp.eq.s32.totalorder %s59, 0
      %s62 = sadd.s32 %s61, 1
      %s63 = scalar_select %p60, %s61, %s62
      %p66 = pneg %p60
      %p67 = scmp.eq.s32.totalorder %s13, 3
      %p68 = por %p66, %p67
      %p69 = scmp.ne.s32.totalorder %s61, %s64
      %p70 = scmp.eq.s32.totalorder %s13, 0
      %p71 = por %p69, %p70
      %p72 = scmp.ne.s32.totalorder %s61, %s64
      %p73 = scmp.eq.s32.totalorder %s18, 3
      %p74 = por %p72, %p73
      %p75 = scmp.ne.s32.totalorder %s64, %s65
      %p76 = scmp.eq.s32.totalorder %s18, 0
      %p77 = por %p75, %p76
      %p78 = scmp.ne.s32.totalorder %s64, %s65
      %p79 = scmp.eq.s32.totalorder %s19, 3
      %p80 = por %p78, %p79
      %p82 = scmp.ne.s32.totalorder %s65, %s81
      %p83 = scmp.eq.s32.totalorder %s19, 0
      %p84 = por %p82, %p83
      %s85 = ssub.s32 %s20, %s32
      %p86 = scmp.eq.s32.totalorder %s85, 0
      %s88 = sadd.s32 %s87, 1
      %s89 = scalar_select %p86, %s87, %s88
      %p92 = pneg %p86
      %p93 = scmp.eq.s32.totalorder %s13, 3
      %p94 = por %p92, %p93
      %p95 = scmp.ne.s32.totalorder %s87, %s90
      %p96 = scmp.eq.s32.totalorder %s13, 0
      %p97 = por %p95, %p96
      %p98 = scmp.ne.s32.totalorder %s87, %s90
      %p99 = scmp.eq.s32.totalorder %s18, 3
      %p100 = por %p98, %p99
      %p101 = scmp.ne.s32.totalorder %s90, %s91
      %p102 = scmp.eq.s32.totalorder %s18, 0
      %p103 = por %p101, %p102
      %p104 = scmp.ne.s32.totalorder %s90, %s91
      %p105 = scmp.eq.s32.totalorder %s19, 3
      %p106 = por %p104, %p105
      %p108 = scmp.ne.s32.totalorder %s91, %s107
      %p109 = scmp.eq.s32.totalorder %s19, 0
      %p110 = por %p108, %p109
      %s111 = ssub.s32 %s21, %s28
      %p112 = scmp.eq.s32.totalorder %s111, 0
      %s114 = sadd.s32 %s113, 1
      %s115 = scalar_select %p112, %s113, %s114
      %p118 = pneg %p112
      %p119 = scmp.eq.s32.totalorder %s13, 3
      %p120 = por %p118, %p119
      %p121 = scmp.ne.s32.totalorder %s113, %s116
      %p122 = scmp.eq.s32.totalorder %s13, 0
      %p123 = por %p121, %p122
      %p124 = scmp.ne.s32.totalorder %s113, %s116
      %p125 = scmp.eq.s32.totalorder %s18, 3
      %p126 = por %p124, %p125
      %p127 = scmp.ne.s32.totalorder %s116, %s117
      %p128 = scmp.eq.s32.totalorder %s18, 0
      %p129 = por %p127, %p128
      %p130 = scmp.ne.s32.totalorder %s116, %s117
      %p131 = scmp.eq.s32.totalorder %s19, 3
      %p132 = por %p130, %p131
      %p134 = scmp.ne.s32.totalorder %s117, %s133
      %p135 = scmp.eq.s32.totalorder %s19, 0
      %p136 = por %p134, %p135
      %s137 = ssub.s32 %s21, %s28
      %s138 = ssub.s32 %s20, %s32
      %s139 = sor.u32 %s137, %s138
      %p140 = scmp.eq.s32.totalorder %s139, 0
      %s142 = sadd.s32 %s141, 1
      %s143 = scalar_select %p140, %s141, %s142
      %p146 = pneg %p140
      %p147 = scmp.eq.s32.totalorder %s13, 3
      %p148 = por %p146, %p147
      %p149 = scmp.ne.s32.totalorder %s141, %s144
      %p150 = scmp.eq.s32.totalorder %s13, 0
      %p151 = por %p149, %p150
      %p152 = scmp.ne.s32.totalorder %s141, %s144
      %p153 = scmp.eq.s32.totalorder %s18, 3
      %p154 = por %p152, %p153
      %p155 = scmp.ne.s32.totalorder %s144, %s145
      %p156 = scmp.eq.s32.totalorder %s18, 0
      %p157 = por %p155, %p156
      %p158 = scmp.ne.s32.totalorder %s144, %s145
      %p159 = scmp.eq.s32.totalorder %s19, 3
      %p160 = por %p158, %p159
      %p162 = scmp.ne.s32.totalorder %s145, %s161
      %p163 = scmp.eq.s32.totalorder %s19, 0
      %p164 = por %p162, %p163
      %p165 = scmp.le.s32.totalorder 1, %s13
      %p166 = scmp.lt.s32.totalorder %s13, 5
      %p167 = pnand %p165, %p166
      %p168 = pneg %p167
      // Predicated region
      $region9: #{tpu_custom_call.1} parent=5 // pred_check
        _
      $region10: #{tpu_custom_call.1} parent=5 // pred_check_branch
        %170 = sbr.rel (%p167) target = $region12
      $region11: #{tpu_custom_call.1} parent=5 // pred_region
        %s171 = ssub.s32 %s13, 1
      $region12: #{tpu_custom_call.1} parent=5 // pred_fallthru
        _
      %p172 = scmp.lt.s32.totalorder %s13, 4
      // Predicated region
      $region13: #{tpu_custom_call.1} parent=5 // pred_check
        %p173 = pneg %p172
      $region14: #{tpu_custom_call.1} parent=5 // pred_check_branch
        %175 = sbr.rel (%p173) target = $region16
      $region15: #{tpu_custom_call.1} parent=5 // pred_region
        // Predicated region
        $region17: #{tpu_custom_call.1} parent=15 // pred_check
          %p176 = pneg %p45
        $region18: #{tpu_custom_call.1} parent=15 // pred_check_branch
          %178 = sbr.rel (%p176) target = $region20
        $region19: #{tpu_custom_call.1} parent=15 // pred_region
          %p179 = scmp.lt.s32.totalorder %s21, 1
          %s180 = scalar_select %p179, %s21, 1
          %s181 = smul.addr %s180, 8
          %s182 = scalar_lea.vmem %s0, %s181
        $region20: #{tpu_custom_call.1} parent=15 // pred_fallthru
          _
        // Predicated region
        $region21: #{tpu_custom_call.1} parent=15 // pred_check
          %p183 = pneg %p71
        $region22: #{tpu_custom_call.1} parent=15 // pred_check_branch
          %185 = sbr.rel (%p183) target = $region24
        $region23: #{tpu_custom_call.1} parent=15 // pred_region
          %s186 = smul.u32 16, %s20
          %p187 = scmp.lt.s32.totalorder %s186, 31
          %s188 = scalar_select %p187, %s186, 31
          %s189 = smul.addr %s188, 8
          %s190 = scalar_lea.vmem %s1, %s189
          %s191 = smul.u32 16, %s20
        $region24: #{tpu_custom_call.1} parent=15 // pred_fallthru
          _
        // Predicated region
        $region25: #{tpu_custom_call.1} parent=15 // pred_check
          %p192 = pneg %p97
        $region26: #{tpu_custom_call.1} parent=15 // pred_check_branch
          %194 = sbr.rel (%p192) target = $region28
        $region27: #{tpu_custom_call.1} parent=15 // pred_region
          %p195 = scmp.lt.s32.totalorder %s20, 1
          %s196 = scalar_select %p195, %s20, 1
          %s197 = scalar_lea.vmem %s2, %s196
        $region28: #{tpu_custom_call.1} parent=15 // pred_fallthru
          _
        // Predicated region
        $region29: #{tpu_custom_call.1} parent=15 // pred_check
          %p198 = pneg %p123
        $region30: #{tpu_custom_call.1} parent=15 // pred_check_branch
          %200 = sbr.rel (%p198) target = $region32
        $region31: #{tpu_custom_call.1} parent=15 // pred_region
          %p201 = scmp.lt.s32.totalorder %s21, 1
          %s202 = scalar_select %p201, %s21, 1
          %s203 = smul.addr %s202, 8
          %s204 = scalar_lea.vmem %s3, %s203
        $region32: #{tpu_custom_call.1} parent=15 // pred_fallthru
          _
      $region16: #{tpu_custom_call.1} parent=5 // pred_fallthru
        _
      %p205 = scmp.le.s32.totalorder 1, %s13
      %p206 = scmp.lt.s32.totalorder %s13, 5
      %p207 = pnand %p205, %p206
      %p208 = pneg %p207
      // Predicated region
      $region33: #{tpu_custom_call.1} parent=5 // pred_check
        _
      $region34: #{tpu_custom_call.1} parent=5 // pred_check_branch
        %210 = sbr.rel (%p207) target = $region36
      $region35: #{tpu_custom_call.1} parent=5 // pred_region
        %s211 = ssub.s32 %s13, 1
        %p212 = scmp.lt.s32.totalorder %s23, 1
        %s213 = scalar_select %p212, %s23, 1
        %s214 = smul.addr %s213, 8
        %s215 = scalar_lea.vmem %s0, %s214
        %p216 = pneg %p51
        %p217 = pneg %p48
        %s218 = smul.u32 16, %s22
        %p219 = scmp.lt.s32.totalorder %s218, 31
        %s220 = scalar_select %p219, %s218, 31
        %s221 = smul.addr %s220, 8
        %s222 = scalar_lea.vmem %s1, %s221
        %p223 = pneg %p77
        %p224 = pneg %p74
        %p225 = scmp.lt.s32.totalorder %s22, 1
        %s226 = scalar_select %p225, %s22, 1
        %s227 = scalar_lea.vmem %s2, %s226
        %p228 = pneg %p103
        %p229 = pneg %p100
        %p230 = scmp.lt.s32.totalorder %s23, 1
        %s231 = scalar_select %p230, %s23, 1
        %s232 = smul.addr %s231, 8
        %s233 = scalar_lea.vmem %s3, %s232
        %p234 = pneg %p129
        %p235 = pneg %p126
        %p236 = pneg %p157
        %p237 = pneg %p154
        %s238 = sand.u32 %s144, 1
        %s239 = scalar_lea.sflag [#allocation3], %s238
        %s240 = sand.u32 %s144, 1
        %s241 = smul.addr %s240, 8
        %s242 = scalar_lea.vmem [#allocation2], %s241
        %p243 = scmp.lt.s32.totalorder %s23, 1
        %s244 = scalar_select %p243, %s23, 1
        %s245 = smul.addr %s244, 8
        %s246 = scalar_lea.vmem %s0, %s245
        %s247 = smul.u32 16, %s22
        %p248 = scmp.lt.s32.totalorder %s247, 31
        %s249 = scalar_select %p248, %s247, 31
        %s250 = smul.addr %s249, 8
        %s251 = scalar_lea.vmem %s1, %s250
        %s252 = smul.u32 16, %s22
        %p253 = scmp.lt.s32.totalorder %s22, 1
        %s254 = scalar_select %p253, %s22, 1
        %s255 = scalar_lea.vmem %s2, %s254
        %p256 = scmp.lt.s32.totalorder %s23, 1
        %s257 = scalar_select %p256, %s23, 1
        %s258 = smul.addr %s257, 8
        %s259 = scalar_lea.vmem %s3, %s258
        %v260 = vld [vmem:[%s246] sm:$0xff]
        %v261 = vld [vmem:[%s251] sm:$0xff]
        %v262 = vld [vmem:[%s251 + $0x8] sm:$0xff]
        %v263 = vld [vmem:[%s251 + $0x10] sm:$0xff]
        %v264 = vld [vmem:[%s251 + $0x18] sm:$0xff]
        %v265 = vld [vmem:[%s251 + $0x20] sm:$0xff]
        %v266 = vld [vmem:[%s251 + $0x28] sm:$0xff]
        %v267 = vld [vmem:[%s251 + $0x30] sm:$0xff]
        %v268 = vld [vmem:[%s251 + $0x38] sm:$0xff]
        %v269 = vld [vmem:[%s251 + $0x40] sm:$0xff]
        %v270 = vld [vmem:[%s251 + $0x48] sm:$0xff]
        %v271 = vld [vmem:[%s251 + $0x50] sm:$0xff]
        %v272 = vld [vmem:[%s251 + $0x58] sm:$0xff]
        %v273 = vld [vmem:[%s251 + $0x60] sm:$0xff]
        %v274 = vld [vmem:[%s251 + $0x68] sm:$0xff]
        %v275 = vld [vmem:[%s251 + $0x70] sm:$0xff]
        %v276 = vld [vmem:[%s251 + $0x78] sm:$0xff]
        %v277 = vld [vmem:[%s255] sm:$0x1]
        %v278 = vld [vmem:[%s259] sm:$0xff]
        %vm279 = vcmask 261120
        %v281 = vsel %vm279, %v260, 0
        %v284 = vsel %vm279, %v261, 0
        %v287 = vsel %vm279, %v262, 0
        %v290 = vsel %vm279, %v263, 0
        %v293 = vsel %vm279, %v264, 0
        %v296 = vsel %vm279, %v265, 0
        %v299 = vsel %vm279, %v266, 0
        %v302 = vsel %vm279, %v267, 0
        %v305 = vsel %vm279, %v268, 0
        %v308 = vsel %vm279, %v269, 0
        %v311 = vsel %vm279, %v270, 0
        %v314 = vsel %vm279, %v271, 0
        %v317 = vsel %vm279, %v272, 0
        %v320 = vsel %vm279, %v273, 0
        %v323 = vsel %vm279, %v274, 0
        %v326 = vsel %vm279, %v275, 0
        %v329 = vsel %vm279, %v276, 0
        %331 = vmatpush.xpose.msra.mxu0 %v329
        %332 = vmatpush.xpose.msra.mxu0 %v326
        %333 = vmatpush.xpose.msra.mxu0 %v323
        %334 = vmatpush.xpose.msra.mxu0 %v320
        %335 = vmatpush.xpose.msra.mxu0 %v317
        %336 = vmatpush.xpose.msra.mxu0 %v314
        %337 = vmatpush.xpose.msra.mxu0 %v311
        %338 = vmatpush.xpose.msra.mxu0 %v308
        %339 = vmatpush.xpose.msra.mxu0 %v305
        %340 = vmatpush.xpose.msra.mxu0 %v302
        %341 = vmatpush.xpose.msra.mxu0 %v299
        %342 = vmatpush.xpose.msra.mxu0 %v296
        %343 = vmatpush.xpose.msra.mxu0 %v293
        %344 = vmatpush.xpose.msra.mxu0 %v290
        %345 = vmatpush.xpose.msra.mxu0 %v287
        %346 = vmatpush.xpose.msra.mxu0 %v284
        %347 = vmatmul.f32.gmra.mxu0 %v281
        %v348 = vpop.f32.mrf.mxu0
        %v349 = vadd.f32 0.0, %v348
        %350 = vdwg.mxu0
        %v352 = vperm.slane %v277, 0
        %v354 = vmul.f32 %v349, %v352
        %v355 = vmax.f32 %v354, -0.9999999
        %v356 = vmin.f32 %v355, 0.9999999
        %v357 = vmul.f32 %v356, %v356
        %v358 = vsub.f32 1.0, %v357
        %v359 = vrsqrt.pop %v358
        %v360 = vmul.f32 %v359, %v358
        %v361 = vmul.f32 %v360, %v359
        %v362 = vmul.f32 0.5, %v361
        %v363 = vsub.f32 1.5, %v362
        %v364 = vmul.f32 %v359, %v363
        %v365 = vmul.f32 %v358, %v364
        %vm366 = vcmp.eq.f32.partialorder %v358, inf
        %v367 = vsel %vm366, %v358, %v365
        %vm368 = vcmp.eq.f32.partialorder %v358, 0.0
        %v369 = vand.u32 %v358, 2147483648
        %v370 = vsel %vm368, %v369, %v367
        %v371 = vmul.f32 %v356, 0.9950042
        %v372 = vmul.f32 %v370, 0.099833414
        %v373 = vsub.f32 %v371, %v372
        %s374 = smul.u32 %s22, 128
        %v375 = vlaneseq
        %v376 = vand.u32 %v375, 127
        %v377 = vstv %s374
        %v378 = vadd.s32 %v377, %v376
        %379 = vset.pattern.permute.xlu0 0
        %380 = vperm.xlu0 %379, %v278
        %v381 = vpop.permute.xlu0 %380
        %vm382 = vcmp.eq.s32.totalorder %v378, %v381
        %v383 = vsel %vm382, %v373, %v356
        %v384 = vmul.f32 %v383, 128.0
        %385 = vst [vmem:[%s242] sm:$0xff] %v384
        %s386 = sand.u32 %s144, 1
        %s387 = scalar_lea.sflag [#allocation3], %s386
        %s388 = sand.u32 %s144, 1
        %s389 = smul.addr %s388, 8
        %s390 = scalar_lea.vmem [#allocation2], %s389
        // Predicated region
        $region37: #{tpu_custom_call.1} parent=35 // pred_check
          %p391 = pneg %p154
        $region38: #{tpu_custom_call.1} parent=35 // pred_check_branch
          %393 = sbr.rel (%p391) target = $region40
        $region39: #{tpu_custom_call.1} parent=35 // pred_region
          %395 = vsyncadd %s387, 0
          %s396 = smul.addr %s23, 2
          %s397 = sadd.s32 %s22, %s396
          %s398 = smul.addr %s397, 8
          %s399 = scalar_lea.hbm %s4, %s398
          %s401 = sshll.u32 %s390, 4
          %s402 = int_to_ptr.vmem [resolvable:$true] %s401
          %s403 = sshll.u32 %s399, 4
          %s404 = int_to_ptr.hbm [resolvable:$true] %s403
          %406 = dma.vmem_to_hbm [thread:$0]  %s402, 128, %s404, %s387
        $region40: #{tpu_custom_call.1} parent=35 // pred_fallthru
          _
      $region36: #{tpu_custom_call.1} parent=5 // pred_fallthru
        _
      %p407 = scmp.le.s32.totalorder 2, %s13
      // Predicated region
      $region41: #{tpu_custom_call.1} parent=5 // pred_check
        %p408 = pneg %p407
      $region42: #{tpu_custom_call.1} parent=5 // pred_check_branch
        %410 = sbr.rel (%p408) target = $region44
      $region43: #{tpu_custom_call.1} parent=5 // pred_region
        %s411 = ssub.s32 %s13, 2
        // Predicated region
        $region45: #{tpu_custom_call.1} parent=43 // pred_check
          %p412 = pneg %p160
        $region46: #{tpu_custom_call.1} parent=43 // pred_check_branch
          %414 = sbr.rel (%p412) target = $region48
        $region47: #{tpu_custom_call.1} parent=43 // pred_region
          %s415 = sand.u32 %s145, 1
          %s416 = scalar_lea.sflag [#allocation3], %s415
          %s417 = sand.u32 %s145, 1
          %s418 = smul.addr %s417, 8
          %s419 = scalar_lea.vmem [#allocation2], %s418
          %421 = dma.done %s416, 128
        $region48: #{tpu_custom_call.1} parent=43 // pred_fallthru
          _
      $region44: #{tpu_custom_call.1} parent=5 // pred_fallthru
        _
    $region6: #{tpu_custom_call.1} parent=1 // loop_footer
      %s17 = sadd.s32 1, %s13
    $region7: #{tpu_custom_call.1} parent=1 // loop_footer_branch
      %12 = sbr.rel target = $region3
    $region8: #{tpu_custom_call.1} parent=1 // loop_exit
      _
    %422 = vsyncpa [#allocation3], 1
    %s423 = scalar_lea.sflag [#allocation3], 1
    %424 = vsyncpa %s423, 1

</llo_original>
